<compile_context>
chip_gen: v7x
topology: tpu7x:2x2x1
jax: 0.10.0
libtpu: 0.0.40
codegen_flags: <defaults>
</compile_context>

<pallas_src>
import math

import jax
import jax.numpy as jnp
from jax import lax
from jax.experimental import pallas as pl
from jax.experimental.pallas import tpu as pltpu

_INV_SQRT2 = 1.0 / math.sqrt(2.0)


def _make_kernel(c_in):
    """Build the kernel body; the contraction strategy is a trace-time choice."""
    small_cin = c_in <= 8

    def kernel(x_ref, w_ref, b_ref, o_ref):
        # x_ref: (C_in, tile_L)      slab of one batch element (L = lane dim)
        # w_ref: (tile_Co, C_in)     weight tile, resident across (batch, L)
        # b_ref: (tile_Co, 1)        bias tile
        # o_ref: (tile_Co, tile_L)   lane-dense output block
        f32 = jnp.float32
        if small_cin:
            # Tiny contraction: unrolled VPU FMAs (outer products) beat an
            # almost-entirely-padded MXU matmul and free the extended-op slot.
            w = w_ref[...]
            x = x_ref[...]
            acc = w[:, 0:1].astype(f32) * x[0:1, :].astype(f32)
            for c in range(1, c_in):
                acc = acc + w[:, c:c + 1].astype(f32) * x[c:c + 1, :].astype(f32)
            y = acc + b_ref[...].astype(f32)
        else:
            y = jnp.dot(w_ref[...], x_ref[...], preferred_element_type=f32)
            y = y + b_ref[...].astype(f32)

        # Exact GELU (matches torch.nn.GELU(approximate='none')):
        #   gelu(y) = 0.5 * y * (1 + erf(y / sqrt(2)))
        if o_ref.dtype == jnp.bfloat16:
            # bf16 VALU path (v6e/v7x): halves the erf-polynomial VALU cost while
            # keeping the exact-erf formulation; output precision is bf16 anyway.
            yh = y.astype(jnp.bfloat16)
            g = (0.5 * yh) * (1.0 + lax.erf(yh * jnp.bfloat16(_INV_SQRT2)))
        else:
            g = 0.5 * y * (1.0 + lax.erf(y * _INV_SQRT2))
        o_ref[...] = g.astype(o_ref.dtype)

    return kernel


def _vmem_capacity_bytes():
    try:
        return int(pltpu.get_tpu_info().vmem_capacity_bytes)
    except Exception:
        return 64 << 20  # conservative fallback (v7x-sized per-core VMEM)


def _choose_tiles(length, c_in, c_out, itemsize, budget_bytes):
    """Pick (tile_co, tile_l).

    Per-step accounting (double-buffered pipeline buffers at the real
    input/output itemsize, plus f32 headroom for matmul/GELU intermediates):
      fixed   : 2 * tile_co * (c_in + 1) * itemsize        (weight tile + bias)
      per col : 2 * c_in * itemsize                        (x slab)
              + 2 * tile_co * itemsize                     (out slab)
              + 3 * tile_co * 4                            (f32 intermediates)
    """
    def cols_for(tile_co):
        fixed = 2 * tile_co * (c_in + 1) * itemsize
        per_col = 2 * (c_in + tile_co) * itemsize + 3 * tile_co * 4
        if fixed >= budget_bytes:
            return 0
        return (budget_bytes - fixed) // per_col

    # Prefer keeping the full weight resident (constant index_map across b, l);
    # if that starves the L tile, tile C_out in multiples of 128.
    tile_co = c_out
    while tile_co > 128 and cols_for(tile_co) < 512:
        tile_co = max(128, ((tile_co // 2) // 128) * 128)

    cols = max(cols_for(tile_co), 128)
    if length <= cols:
        tile_l = length                          # full-L block: always legal
    else:
        tile_l = max(128, min(8192, (cols // 128) * 128))
    return tile_co, tile_l


def conv_gelu(x_ncl, weight, bias, *, tile_l=None, tile_co=None):
    """x_ncl:  (N, C_in, L)
       weight: (C_out, C_in, 1)   (torch Conv1d weight, kernel_size=1)
       bias:   (C_out,)
       returns (N, C_out, L), same dtype as x_ncl."""
    n, c_in, length = x_ncl.shape
    c_out = weight.shape[0]
    assert weight.shape == (c_out, c_in, 1), "only kernel_size=1 supported"

    dtype = x_ncl.dtype
    itemsize = jnp.dtype(dtype).itemsize

    cap = _vmem_capacity_bytes()
    budget = int(cap * 0.60)          # tile budget: ~38 MiB on v7x, ~76 MiB v5e/v6e
    vmem_limit = int(cap * 0.85)      # scoped limit with headroom for compiler scratch

    auto_co, auto_l = _choose_tiles(length, c_in, c_out, itemsize, budget)
    tile_co = min(c_out, tile_co if tile_co is not None else auto_co)
    tile_l = min(length, tile_l if tile_l is not None else auto_l)

    # Cast params to the activation dtype (native MXU mode for bf16, halves the
    # resident weight VMEM); accumulation stays f32 inside the kernel.
    w_mat = weight[:, :, 0].astype(dtype)          # (C_out, C_in)
    b_mat = bias.reshape(c_out, 1).astype(dtype)   # (C_out, 1)

    grid = (pl.cdiv(c_out, tile_co), n, pl.cdiv(length, tile_l))

    cost = pl.CostEstimate(
        flops=2 * n * length * c_in * c_out,
        transcendentals=n * length * c_out,
        bytes_accessed=int(itemsize * (n * c_in * length
                                       + c_out * c_in + c_out
                                       + n * c_out * length)),
    )

    return pl.pallas_call(
        _make_kernel(c_in),
        out_shape=jax.ShapeDtypeStruct((n, c_out, length), dtype),
        grid_spec=pltpu.PrefetchScalarGridSpec(
            num_scalar_prefetch=0,
            grid=grid,
            in_specs=[
                # x slab (C_in, tile_L): reused across C_out tiles.
                pl.BlockSpec((None, c_in, tile_l), lambda co, b, l: (b, 0, l)),
                # weight tile: resident across (batch, L) grid axes.
                pl.BlockSpec((tile_co, c_in), lambda co, b, l: (co, 0)),
                pl.BlockSpec((tile_co, 1), lambda co, b, l: (co, 0)),
            ],
            out_specs=pl.BlockSpec((None, tile_co, tile_l),
                                   lambda co, b, l: (b, co, l)),
        ),
        compiler_params=pltpu.CompilerParams(
            dimension_semantics=("parallel", "parallel", "parallel"),
            vmem_limit_bytes=vmem_limit,
        ),
        cost_estimate=cost,
    )(x_ncl, w_mat, b_mat)


def _ref_conv_gelu(x, w, b):
    lin = jnp.einsum("ncl,oc->nol", x, w[:, :, 0]) + b[None, :, None]
    return 0.5 * lin * (1.0 + lax.erf(lin * _INV_SQRT2))


if __name__ == "__main__":
    key = jax.random.PRNGKey(0)
    k_x, k_w, k_b, k_x2, k_x3, k_w3, k_b3 = jax.random.split(key, 7)

    # Shapes consistent with the module: batch=2, in_channels=4, out_channels=8, L=16.
    N, C_IN, C_OUT, L = 2, 4, 8, 16
    bound = 1.0 / math.sqrt(C_IN * 1)
    x = jax.random.normal(k_x, (N, C_IN, L), dtype=jnp.float32)
    w = jax.random.uniform(k_w, (C_OUT, C_IN, 1), minval=-bound, maxval=bound,
                           dtype=jnp.float32)
    b = jax.random.uniform(k_b, (C_OUT,), minval=-bound, maxval=bound,
                           dtype=jnp.float32)

    out = conv_gelu(x, w, b)
    jax.block_until_ready(out)
    assert out.shape == (N, C_OUT, L)
    assert jnp.allclose(out, _ref_conv_gelu(x, w, b), atol=1e-5, rtol=1e-5)

    # Non-multiple-of-128 L with a small explicit tile: exercises the pad-free
    # cdiv grid + masked boundary block path (no jnp.pad / output slice).
    L2 = 300
    x2 = jax.random.normal(k_x2, (N, C_IN, L2), dtype=jnp.float32)
    out2 = conv_gelu(x2, w, b, tile_l=128)
    jax.block_until_ready(out2)
    assert out2.shape == (N, C_OUT, L2)
    assert jnp.allclose(out2, _ref_conv_gelu(x2, w, b), atol=1e-5, rtol=1e-5)

    # Larger channel count: exercises the MXU (jnp.dot) path and C_out tiling.
    C_IN3, C_OUT3, L3 = 16, 16, 256
    bound3 = 1.0 / math.sqrt(C_IN3)
    x3 = jax.random.normal(k_x3, (N, C_IN3, L3), dtype=jnp.float32)
    w3 = jax.random.uniform(k_w3, (C_OUT3, C_IN3, 1), minval=-bound3, maxval=bound3,
                            dtype=jnp.float32)
    b3 = jax.random.uniform(k_b3, (C_OUT3,), minval=-bound3, maxval=bound3,
                            dtype=jnp.float32)
    out3 = conv_gelu(x3, w3, b3, tile_l=128, tile_co=8)
    jax.block_until_ready(out3)
    assert out3.shape == (N, C_OUT3, L3)
    assert jnp.allclose(out3, _ref_conv_gelu(x3, w3, b3), atol=1e-5, rtol=1e-5)

    print("KERNEL_OK")
</pallas_src>

<mosaic_0001>
module attributes {stable_mosaic.version = 11 : i64} {
  func.func @kernel(%arg0: i32, %arg1: i32, %arg2: i32, %arg3: memref<1x4x16xf32, #tpu.memory_space<vmem>>, %arg4: memref<8x4xf32, #tpu.memory_space<vmem>>, %arg5: memref<8x1xf32, #tpu.memory_space<vmem>>, %arg6: memref<1x8x16xf32, #tpu.memory_space<vmem>>) attributes {dimension_semantics = [#tpu.dimension_semantics<parallel>, #tpu.dimension_semantics<parallel>, #tpu.dimension_semantics<parallel>], iteration_bounds = array<i64: 1, 2, 1>, scalar_prefetch = 0 : i64, scratch_operands = 0 : i64, tpu.core_type = #tpu.core_type<tc>, window_params = [{transform_indices = @transform_0, window_bounds = array<i64: 1, 4, 16>}, {transform_indices = @transform_1, window_bounds = array<i64: 8, 4>}, {transform_indices = @transform_2, window_bounds = array<i64: 8, 1>}, {transform_indices = @transform_3, window_bounds = array<i64: 1, 8, 16>}]} {
    %c0 = arith.constant 0 : index
    %c0_0 = arith.constant 0 : index
    %0 = vector.load %arg4[%c0, %c0_0] : memref<8x4xf32, #tpu.memory_space<vmem>>, vector<8x4xf32>
    %c0_1 = arith.constant 0 : index
    %c0_2 = arith.constant 0 : index
    %c0_3 = arith.constant 0 : index
    %1 = vector.load %arg3[%c0_1, %c0_2, %c0_3] : memref<1x4x16xf32, #tpu.memory_space<vmem>>, vector<1x4x16xf32>
    %2 = vector.shape_cast %1 : vector<1x4x16xf32> to vector<4x16xf32>
    %3 = vector.extract_strided_slice %0 {offsets = [0, 0], sizes = [8, 1], strides = [1, 1]} : vector<8x4xf32> to vector<8x1xf32>
    %4 = vector.extract_strided_slice %2 {offsets = [0, 0], sizes = [1, 16], strides = [1, 1]} : vector<4x16xf32> to vector<1x16xf32>
    %5 = vector.broadcast %3 : vector<8x1xf32> to vector<8x16xf32>
    %6 = vector.broadcast %4 : vector<1x16xf32> to vector<8x16xf32>
    %7 = arith.mulf %5, %6 : vector<8x16xf32>
    %8 = vector.extract_strided_slice %0 {offsets = [0, 1], sizes = [8, 1], strides = [1, 1]} : vector<8x4xf32> to vector<8x1xf32>
    %9 = vector.extract_strided_slice %2 {offsets = [1, 0], sizes = [1, 16], strides = [1, 1]} : vector<4x16xf32> to vector<1x16xf32>
    %10 = vector.broadcast %8 : vector<8x1xf32> to vector<8x16xf32>
    %11 = vector.broadcast %9 : vector<1x16xf32> to vector<8x16xf32>
    %12 = arith.mulf %10, %11 : vector<8x16xf32>
    %13 = arith.addf %7, %12 : vector<8x16xf32>
    %14 = vector.extract_strided_slice %0 {offsets = [0, 2], sizes = [8, 1], strides = [1, 1]} : vector<8x4xf32> to vector<8x1xf32>
    %15 = vector.extract_strided_slice %2 {offsets = [2, 0], sizes = [1, 16], strides = [1, 1]} : vector<4x16xf32> to vector<1x16xf32>
    %16 = vector.broadcast %14 : vector<8x1xf32> to vector<8x16xf32>
    %17 = vector.broadcast %15 : vector<1x16xf32> to vector<8x16xf32>
    %18 = arith.mulf %16, %17 : vector<8x16xf32>
    %19 = arith.addf %13, %18 : vector<8x16xf32>
    %20 = vector.extract_strided_slice %0 {offsets = [0, 3], sizes = [8, 1], strides = [1, 1]} : vector<8x4xf32> to vector<8x1xf32>
    %21 = vector.extract_strided_slice %2 {offsets = [3, 0], sizes = [1, 16], strides = [1, 1]} : vector<4x16xf32> to vector<1x16xf32>
    %22 = vector.broadcast %20 : vector<8x1xf32> to vector<8x16xf32>
    %23 = vector.broadcast %21 : vector<1x16xf32> to vector<8x16xf32>
    %24 = arith.mulf %22, %23 : vector<8x16xf32>
    %25 = arith.addf %19, %24 : vector<8x16xf32>
    %c0_4 = arith.constant 0 : index
    %c0_5 = arith.constant 0 : index
    %26 = vector.load %arg5[%c0_4, %c0_5] : memref<8x1xf32, #tpu.memory_space<vmem>>, vector<8x1xf32>
    %27 = vector.broadcast %26 : vector<8x1xf32> to vector<8x16xf32>
    %28 = arith.addf %25, %27 : vector<8x16xf32>
    %cst = arith.constant 5.000000e-01 : f32
    %29 = vector.broadcast %cst : f32 to vector<8x16xf32>
    %30 = arith.mulf %29, %28 : vector<8x16xf32>
    %cst_6 = arith.constant 0.707106769 : f32
    %31 = vector.broadcast %cst_6 : f32 to vector<8x16xf32>
    %32 = arith.mulf %28, %31 : vector<8x16xf32>
    %33 = math.erf %32 : vector<8x16xf32>
    %cst_7 = arith.constant 1.000000e+00 : f32
    %34 = vector.broadcast %cst_7 : f32 to vector<8x16xf32>
    %35 = arith.addf %34, %33 : vector<8x16xf32>
    %36 = arith.mulf %30, %35 : vector<8x16xf32>
    %c0_8 = arith.constant 0 : index
    %c0_9 = arith.constant 0 : index
    %c0_10 = arith.constant 0 : index
    %37 = vector.load %arg6[%c0_8, %c0_9, %c0_10] : memref<1x8x16xf32, #tpu.memory_space<vmem>>, vector<1x8x16xf32>
    %38 = vector.shape_cast %37 : vector<1x8x16xf32> to vector<8x16xf32>
    %39 = vector.shape_cast %36 : vector<8x16xf32> to vector<1x8x16xf32>
    tpu.vector_store %arg6[%c0_8, %c0_9, %c0_10], %39 {strides = array<i32>} : memref<1x8x16xf32, #tpu.memory_space<vmem>>, vector<1x8x16xf32>,
    return
  }
  func.func @transform_0(%arg0: i32, %arg1: i32, %arg2: i32) -> (i32, i32, i32) {
    %c0_i32 = arith.constant 0 : i32
    %c0_i32_0 = arith.constant 0 : i32
    return %arg1, %c0_i32, %arg2 : i32, i32, i32
  }
  func.func @transform_1(%arg0: i32, %arg1: i32, %arg2: i32) -> (i32, i32) {
    %c0_i32 = arith.constant 0 : i32
    %c0_i32_0 = arith.constant 0 : i32
    return %arg0, %c0_i32 : i32, i32
  }
  func.func @transform_2(%arg0: i32, %arg1: i32, %arg2: i32) -> (i32, i32) {
    %c0_i32 = arith.constant 0 : i32
    %c0_i32_0 = arith.constant 0 : i32
    return %arg0, %c0_i32 : i32, i32
  }
  func.func @transform_3(%arg0: i32, %arg1: i32, %arg2: i32) -> (i32, i32, i32) {
    %c0_i32 = arith.constant 0 : i32
    return %arg1, %arg0, %arg2 : i32, i32, i32
  }
}

</mosaic_0001>

<llo_original>
// kernel: tpu_custom_call.1
$region0: #{tpu_custom_call.1}
  #allocation0 [shape = 'u32[]', space=smem, size = 0x4, offset = 0x4, fixed_abs, tag = 'smem constant byte address 0x4 - core index']
  #allocation1 [shape = 'u32[144,128]{1,0:T(1,128)}', space=vmem, size = 0x12000, scoped, tag = 'internal scratch']
  %s0 = inlined_call_operand.vmem [shape: f32[2,4,16], index: 0, kind: input, shape index: {}]
  %s1 = inlined_call_operand.vmem [shape: f32[8,4], index: 1, kind: input, shape index: {}]
  %s2 = inlined_call_operand.vmem [shape: f32[8,1], index: 2, kind: input, shape index: {}]
  %s3 = inlined_call_operand.hbm [shape: f32[2,8,16], index: 3, kind: output, shape index: {}]
  %s4 = sld [smem:[#allocation0]]
  $region45: #{tpu_custom_call.1} parent=0
    _
  %s6 = ssub.s32 1, %s4
  %s7 = scalar_select 0, %s6, %s4
  $region1: #{tpu_custom_call.1} parent=0
    #allocation2 [shape = 'u8[8192]{0}', space=vmem, size = 0x2000, scoped, tag = 'output window, operand 0']
    #allocation3 [shape = 's32[2]{0}', space=sflag, size = 0x8, scoped, tag = 'scoped memory for tpu_custom_call.1']
    %8 = vsyncpa [#allocation3], 0
    %s9 = scalar_lea.sflag [#allocation3], 1
    %10 = vsyncpa %s9, 0
    loop: start=0, step=1, limit=4
    $region2: #{tpu_custom_call.1} parent=1 // loop_pre_header
      _
    $region3: #{tpu_custom_call.1} parent=1 // loop_header
      %s12 = sphi 0, %s16
      %p13 = scmp.ge.s32.totalorder %s12, 4
      %s19 = sphi 0, %s38
      %s20 = sphi 0, %s34
      %s21 = sphi 0, %s30
      %s22 = sphi 0, %s19
      %s23 = sphi 0, %s20
      %s24 = sphi 0, %s21
      %s25 = sphi 0, %s22
      %s26 = sphi 0, %s23
      %s27 = sphi 0, %s24
      %s43 = sphi 0, %s45
      %s46 = sphi 0, %s43
      %s47 = sphi 0, %s46
      %s63 = sphi 0, %s47
      %s69 = sphi 0, %s71
      %s72 = sphi 0, %s69
      %s73 = sphi 0, %s72
      %s89 = sphi 0, %s73
      %s95 = sphi 0, %s97
      %s98 = sphi 0, %s95
      %s99 = sphi 0, %s98
      %s115 = sphi 0, %s99
      %s125 = sphi 0, %s127
      %s128 = sphi 0, %s125
      %s129 = sphi 0, %s128
      %s145 = sphi 0, %s129
    $region4: #{tpu_custom_call.1} parent=1 // loop_header_branch
      %15 = sbr.rel (%p13) target = $region8
    $region5: #{tpu_custom_call.1} parent=1 // loop_body
      %s17 = ssub.s32 %s12, 1
      %s18 = ssub.s32 %s12, 2
      %s28 = sadd.s32 1, %s21
      %p29 = scmp.ge.s32.totalorder %s28, 1
      %s30 = scalar_select %p29, 0, %s28
      %s31 = sadd.s32 1, %s20
      %s32 = scalar_select %p29, %s31, %s20
      %p33 = scmp.ge.s32.totalorder %s32, 2
      %s34 = scalar_select %p33, 0, %s32
      %s35 = sadd.s32 1, %s19
      %s36 = scalar_select %p33, %s35, %s19
      %p37 = scmp.ge.s32.totalorder %s36, 1
      %s38 = scalar_select %p37, 0, %s36
      %s39 = ssub.s32 %s20, %s34
      %s40 = ssub.s32 %s21, %s30
      %s41 = sor.u32 %s39, %s40
      %p42 = scmp.eq.s32.totalorder %s41, 0
      %s44 = sadd.s32 %s43, 1
      %s45 = scalar_select %p42, %s43, %s44
      %p48 = pneg %p42
      %p49 = scmp.eq.s32.totalorder %s12, 1
      %p50 = por %p48, %p49
      %p51 = scmp.ne.s32.totalorder %s43, %s46
      %p52 = scmp.eq.s32.totalorder %s12, 0
      %p53 = por %p51, %p52
      %p54 = scmp.ne.s32.totalorder %s43, %s46
      %p55 = scmp.eq.s32.totalorder %s17, 1
      %p56 = por %p54, %p55
      %p57 = scmp.ne.s32.totalorder %s46, %s47
      %p58 = scmp.eq.s32.totalorder %s17, 0
      %p59 = por %p57, %p58
      %p60 = scmp.ne.s32.totalorder %s46, %s47
      %p61 = scmp.eq.s32.totalorder %s18, 1
      %p62 = por %p60, %p61
      %p64 = scmp.ne.s32.totalorder %s47, %s63
      %p65 = scmp.eq.s32.totalorder %s18, 0
      %p66 = por %p64, %p65
      %s67 = ssub.s32 %s19, %s38
      %p68 = scmp.eq.s32.totalorder %s67, 0
      %s70 = sadd.s32 %s69, 1
      %s71 = scalar_select %p68, %s69, %s70
      %p74 = pneg %p68
      %p75 = scmp.eq.s32.totalorder %s12, 1
      %p76 = por %p74, %p75
      %p77 = scmp.ne.s32.totalorder %s69, %s72
      %p78 = scmp.eq.s32.totalorder %s12, 0
      %p79 = por %p77, %p78
      %p80 = scmp.ne.s32.totalorder %s69, %s72
      %p81 = scmp.eq.s32.totalorder %s17, 1
      %p82 = por %p80, %p81
      %p83 = scmp.ne.s32.totalorder %s72, %s73
      %p84 = scmp.eq.s32.totalorder %s17, 0
      %p85 = por %p83, %p84
      %p86 = scmp.ne.s32.totalorder %s72, %s73
      %p87 = scmp.eq.s32.totalorder %s18, 1
      %p88 = por %p86, %p87
      %p90 = scmp.ne.s32.totalorder %s73, %s89
      %p91 = scmp.eq.s32.totalorder %s18, 0
      %p92 = por %p90, %p91
      %s93 = ssub.s32 %s19, %s38
      %p94 = scmp.eq.s32.totalorder %s93, 0
      %s96 = sadd.s32 %s95, 1
      %s97 = scalar_select %p94, %s95, %s96
      %p100 = pneg %p94
      %p101 = scmp.eq.s32.totalorder %s12, 1
      %p102 = por %p100, %p101
      %p103 = scmp.ne.s32.totalorder %s95, %s98
      %p104 = scmp.eq.s32.totalorder %s12, 0
      %p105 = por %p103, %p104
      %p106 = scmp.ne.s32.totalorder %s95, %s98
      %p107 = scmp.eq.s32.totalorder %s17, 1
      %p108 = por %p106, %p107
      %p109 = scmp.ne.s32.totalorder %s98, %s99
      %p110 = scmp.eq.s32.totalorder %s17, 0
      %p111 = por %p109, %p110
      %p112 = scmp.ne.s32.totalorder %s98, %s99
      %p113 = scmp.eq.s32.totalorder %s18, 1
      %p114 = por %p112, %p113
      %p116 = scmp.ne.s32.totalorder %s99, %s115
      %p117 = scmp.eq.s32.totalorder %s18, 0
      %p118 = por %p116, %p117
      %s119 = ssub.s32 %s20, %s34
      %s120 = ssub.s32 %s19, %s38
      %s121 = sor.u32 %s119, %s120
      %s122 = ssub.s32 %s21, %s30
      %s123 = sor.u32 %s121, %s122
      %p124 = scmp.eq.s32.totalorder %s123, 0
      %s126 = sadd.s32 %s125, 1
      %s127 = scalar_select %p124, %s125, %s126
      %p130 = pneg %p124
      %p131 = scmp.eq.s32.totalorder %s12, 1
      %p132 = por %p130, %p131
      %p133 = scmp.ne.s32.totalorder %s125, %s128
      %p134 = scmp.eq.s32.totalorder %s12, 0
      %p135 = por %p133, %p134
      %p136 = scmp.ne.s32.totalorder %s125, %s128
      %p137 = scmp.eq.s32.totalorder %s17, 1
      %p138 = por %p136, %p137
      %p139 = scmp.ne.s32.totalorder %s128, %s129
      %p140 = scmp.eq.s32.totalorder %s17, 0
      %p141 = por %p139, %p140
      %p142 = scmp.ne.s32.totalorder %s128, %s129
      %p143 = scmp.eq.s32.totalorder %s18, 1
      %p144 = por %p142, %p143
      %p146 = scmp.ne.s32.totalorder %s129, %s145
      %p147 = scmp.eq.s32.totalorder %s18, 0
      %p148 = por %p146, %p147
      %p149 = scmp.le.s32.totalorder 1, %s12
      %p150 = scmp.lt.s32.totalorder %s12, 3
      %p151 = pnand %p149, %p150
      %p152 = pneg %p151
      // Predicated region
      $region9: #{tpu_custom_call.1} parent=5 // pred_check
        _
      $region10: #{tpu_custom_call.1} parent=5 // pred_check_branch
        %154 = sbr.rel (%p151) target = $region12
      $region11: #{tpu_custom_call.1} parent=5 // pred_region
        %s155 = ssub.s32 %s12, 1
        // Predicated region
        $region13: #{tpu_custom_call.1} parent=11 // pred_check
          %p156 = pneg %p85
        $region14: #{tpu_custom_call.1} parent=11 // pred_check_branch
          %158 = sbr.rel (%p156) target = $region16
        $region15: #{tpu_custom_call.1} parent=11 // pred_region
          %p159 = scmp.lt.s32.totalorder %s22, 0
          %s160 = scalar_select %p159, %s22, 0
          %s161 = smul.addr %s160, 8
          %s162 = scalar_lea.vmem %s1, %s161
        $region16: #{tpu_custom_call.1} parent=11 // pred_fallthru
          _
        // Predicated region
        $region17: #{tpu_custom_call.1} parent=11 // pred_check
          %p163 = pneg %p111
        $region18: #{tpu_custom_call.1} parent=11 // pred_check_branch
          %165 = sbr.rel (%p163) target = $region20
        $region19: #{tpu_custom_call.1} parent=11 // pred_region
          %p166 = scmp.lt.s32.totalorder %s22, 0
          %s167 = scalar_select %p166, %s22, 0
          %s168 = smul.addr %s167, 8
          %s169 = scalar_lea.vmem %s2, %s168
        $region20: #{tpu_custom_call.1} parent=11 // pred_fallthru
          _
      $region12: #{tpu_custom_call.1} parent=5 // pred_fallthru
        _
      %p170 = scmp.lt.s32.totalorder %s12, 2
      // Predicated region
      $region21: #{tpu_custom_call.1} parent=5 // pred_check
        %p171 = pneg %p170
      $region22: #{tpu_custom_call.1} parent=5 // pred_check_branch
        %173 = sbr.rel (%p171) target = $region24
      $region23: #{tpu_custom_call.1} parent=5 // pred_region
        // Predicated region
        $region25: #{tpu_custom_call.1} parent=23 // pred_check
          %p174 = pneg %p53
        $region26: #{tpu_custom_call.1} parent=23 // pred_check_branch
          %176 = sbr.rel (%p174) target = $region28
        $region27: #{tpu_custom_call.1} parent=23 // pred_region
          %p177 = scmp.lt.s32.totalorder %s20, 1
          %s178 = scalar_select %p177, %s20, 1
          %p179 = scmp.lt.s32.totalorder %s21, 0
          %s180 = scalar_select %p179, %s21, 0
          %s181 = sadd.s32 %s180, %s178
          %s182 = smul.addr %s181, 4
          %s183 = scalar_lea.vmem %s0, %s182
        $region28: #{tpu_custom_call.1} parent=23 // pred_fallthru
          _
      $region24: #{tpu_custom_call.1} parent=5 // pred_fallthru
        _
      %p184 = scmp.le.s32.totalorder 1, %s12
      %p185 = scmp.lt.s32.totalorder %s12, 3
      %p186 = pnand %p184, %p185
      %p187 = pneg %p186
      // Predicated region
      $region29: #{tpu_custom_call.1} parent=5 // pred_check
        _
      $region30: #{tpu_custom_call.1} parent=5 // pred_check_branch
        %189 = sbr.rel (%p186) target = $region32
      $region31: #{tpu_custom_call.1} parent=5 // pred_region
        %s190 = ssub.s32 %s12, 1
        %p191 = scmp.lt.s32.totalorder %s23, 1
        %s192 = scalar_select %p191, %s23, 1
        %p193 = scmp.lt.s32.totalorder %s24, 0
        %s194 = scalar_select %p193, %s24, 0
        %s195 = sadd.s32 %s194, %s192
        %s196 = smul.addr %s195, 4
        %s197 = scalar_lea.vmem %s0, %s196
        %p198 = pneg %p59
        %p199 = pneg %p56
        %p200 = scmp.lt.s32.totalorder %s22, 0
        %s201 = scalar_select %p200, %s22, 0
        %s202 = smul.addr %s201, 8
        %s203 = scalar_lea.vmem %s1, %s202
        %p204 = pneg %p85
        %p205 = pneg %p82
        %p206 = scmp.lt.s32.totalorder %s22, 0
        %s207 = scalar_select %p206, %s22, 0
        %s208 = smul.addr %s207, 8
        %s209 = scalar_lea.vmem %s2, %s208
        %p210 = pneg %p111
        %p211 = pneg %p108
        %p212 = pneg %p141
        %p213 = pneg %p138
        %s214 = sand.u32 %s128, 1
        %s215 = scalar_lea.sflag [#allocation3], %s214
        %s216 = sand.u32 %s128, 1
        %s217 = smul.addr %s216, 8
        %s218 = scalar_lea.vmem [#allocation2], %s217
        %p219 = scmp.lt.s32.totalorder %s23, 1
        %s220 = scalar_select %p219, %s23, 1
        %p221 = scmp.lt.s32.totalorder %s24, 0
        %s222 = scalar_select %p221, %s24, 0
        %s223 = sadd.s32 %s222, %s220
        %s224 = smul.addr %s223, 4
        %s225 = scalar_lea.vmem %s0, %s224
        %p226 = scmp.lt.s32.totalorder %s22, 0
        %s227 = scalar_select %p226, %s22, 0
        %s228 = smul.addr %s227, 8
        %s229 = scalar_lea.vmem %s1, %s228
        %p230 = scmp.lt.s32.totalorder %s22, 0
        %s231 = scalar_select %p230, %s22, 0
        %s232 = smul.addr %s231, 8
        %s233 = scalar_lea.vmem %s2, %s232
        %v234 = vld [vmem:[%s229] sm:$0xff]
        %v235 = vld [vmem:[%s225] sm:$0xf]
        %237 = vset.pattern.permute.xlu0 0
        %238 = vperm.xlu0 %237, %v234
        %v239 = vpop.permute.xlu0 %238
        %v241 = vlaneseq
        %v242 = vshrl.u32 %v241, 7
        %v243 = vsub.s32 0, %v242
        %v244 = vrot.slane %v235, %v243
        %v245 = vmul.f32 %v239, %v244
        %246 = vset.pattern.permute.xlu0 1
        %247 = vperm.xlu0 %246, %v234
        %v248 = vpop.permute.xlu0 %247
        %v250 = vlaneseq
        %v251 = vshrl.u32 %v250, 7
        %v252 = vsub.s32 1, %v251
        %v253 = vrot.slane %v235, %v252
        %v254 = vmul.f32 %v248, %v253
        %v255 = vadd.f32 %v245, %v254
        %256 = vset.pattern.permute.xlu0 2
        %257 = vperm.xlu0 %256, %v234
        %v258 = vpop.permute.xlu0 %257
        %v260 = vlaneseq
        %v261 = vshrl.u32 %v260, 7
        %v262 = vsub.s32 2, %v261
        %v263 = vrot.slane %v235, %v262
        %v264 = vmul.f32 %v258, %v263
        %v265 = vadd.f32 %v255, %v264
        %266 = vset.pattern.permute.xlu0 3
        %267 = vperm.xlu0 %266, %v234
        %v268 = vpop.permute.xlu0 %267
        %v270 = vlaneseq
        %v271 = vshrl.u32 %v270, 7
        %v272 = vsub.s32 3, %v271
        %v273 = vrot.slane %v235, %v272
        %v274 = vmul.f32 %v268, %v273
        %v275 = vadd.f32 %v265, %v274
        %v276 = vld [vmem:[%s233] sm:$0xff]
        %278 = vset.pattern.permute.xlu0 0
        %279 = vperm.xlu0 %278, %v276
        %v280 = vpop.permute.xlu0 %279
        %v282 = vadd.f32 %v275, %v280
        %v283 = vmul.f32 %v282, 0.5
        %v284 = vmul.f32 %v282, 0.70710677
        %v285 = verf.f32.pop %v284
        %v286 = vadd.f32 %v285, 1.0
        %v287 = vmul.f32 %v283, %v286
        %vm288 = vcmask 130048
        %289 = vst.msk [vmem:[%s218] sm:$0xff] %vm288, %v287
        %s290 = sand.u32 %s128, 1
        %s291 = scalar_lea.sflag [#allocation3], %s290
        %s292 = sand.u32 %s128, 1
        %s293 = smul.addr %s292, 8
        %s294 = scalar_lea.vmem [#allocation2], %s293
        // Predicated region
        $region33: #{tpu_custom_call.1} parent=31 // pred_check
          %p295 = pneg %p138
        $region34: #{tpu_custom_call.1} parent=31 // pred_check_branch
          %297 = sbr.rel (%p295) target = $region36
        $region35: #{tpu_custom_call.1} parent=31 // pred_region
          %s299 = ssub.s32 128, 128
          %300 = vsyncadd %s291, %s299
          %s301 = sadd.s32 %s24, %s22
          %s302 = sadd.s32 %s301, %s23
          %s303 = smul.addr %s302, 128
          %s304 = scalar_lea.hbm %s3, %s303
          %s306 = sshll.u32 %s294, 4
          %s307 = int_to_ptr.vmem [resolvable:$true] %s306
          %309 = dma.vmem_to_hbm [thread:$0]  %s307, 128, %s304, %s291
        $region36: #{tpu_custom_call.1} parent=31 // pred_fallthru
          _
      $region32: #{tpu_custom_call.1} parent=5 // pred_fallthru
        _
      %p310 = scmp.le.s32.totalorder 2, %s12
      // Predicated region
      $region37: #{tpu_custom_call.1} parent=5 // pred_check
        %p311 = pneg %p310
      $region38: #{tpu_custom_call.1} parent=5 // pred_check_branch
        %313 = sbr.rel (%p311) target = $region40
      $region39: #{tpu_custom_call.1} parent=5 // pred_region
        %s314 = ssub.s32 %s12, 2
        // Predicated region
        $region41: #{tpu_custom_call.1} parent=39 // pred_check
          %p315 = pneg %p144
        $region42: #{tpu_custom_call.1} parent=39 // pred_check_branch
          %317 = sbr.rel (%p315) target = $region44
        $region43: #{tpu_custom_call.1} parent=39 // pred_region
          %s318 = sand.u32 %s129, 1
          %s319 = scalar_lea.sflag [#allocation3], %s318
          %s320 = sand.u32 %s129, 1
          %s321 = smul.addr %s320, 8
          %s322 = scalar_lea.vmem [#allocation2], %s321
          %323 = dma.done %s319, 128
        $region44: #{tpu_custom_call.1} parent=39 // pred_fallthru
          _
      $region40: #{tpu_custom_call.1} parent=5 // pred_fallthru
        _
    $region6: #{tpu_custom_call.1} parent=1 // loop_footer
      %s16 = sadd.s32 1, %s12
    $region7: #{tpu_custom_call.1} parent=1 // loop_footer_branch
      %11 = sbr.rel target = $region3
    $region8: #{tpu_custom_call.1} parent=1 // loop_exit
      _
    %324 = vsyncpa [#allocation3], 1
    %s325 = scalar_lea.sflag [#allocation3], 1
    %326 = vsyncpa %s325, 1

</llo_original>
